<compile_context>
chip_gen: v6e
topology: v6e:2x2x1
jax: 0.10.0
libtpu: 0.0.40
codegen_flags: <defaults>
</compile_context>

<pallas_src>
import functools

import jax
import jax.numpy as jnp
from jax.experimental import pallas as pl
from jax.experimental.pallas import tpu as pltpu


def _round_up(n, m):
    return ((n + m - 1) // m) * m


def _mlp_encoder_kernel(x_ref, w1_ref, b1_ref, w2_ref, b2_ref, we_ref, be_ref,
                        o_ref):
    """Fused lane-packed MLP: ReLU(x@W1+b1) -> ReLU(.@W2+b2) -> .@We+be."""
    cdt = w1_ref.dtype                    # operand dtype: f32 or bf16
    x = x_ref[...].astype(cdt)            # per-tile cast (VPU; hidden under MXU/DMA)
    h = jnp.dot(x, w1_ref[...], preferred_element_type=jnp.float32) + b1_ref[...]
    h = jnp.maximum(h, 0.0)
    h = jnp.dot(h.astype(cdt), w2_ref[...],
                preferred_element_type=jnp.float32) + b2_ref[...]
    h = jnp.maximum(h, 0.0)
    out = jnp.dot(h.astype(cdt), we_ref[...],
                  preferred_element_type=jnp.float32) + be_ref[...]
    o_ref[...] = out.astype(o_ref.dtype)


def _resident_spec(shape):
    """Constant-index (VMEM-resident) operand: identical block every grid step.

    Single-buffer it when this JAX supports pipeline_mode -- the block never
    changes, so double-buffering it is pure VMEM waste.
    """
    idx = lambda i: (0, 0)
    try:
        return pl.BlockSpec(shape, idx, pipeline_mode=pl.Buffered(1))
    except Exception:                      # older JAX: fall back to default buffering
        return pl.BlockSpec(shape, idx)


def pack_mlp_encoder_params(w1, b1, w2, b2, we, be, *, pack=8, use_bf16=False):
    """Build the lane-packed (block-diagonal) parameters ONCE, outside the hot loop.

    pack=8 fills 128 lanes for goal_dim=16 and matches the v6e/v7x 256-wide MXU;
    pack=4 is the natural fit for v5e's 128x128 MXU.  Weights may be pre-cast to
    bf16 (MXU operands); biases stay f32 (bias-add / ReLU run on the VPU in f32).
    """
    cdt = jnp.bfloat16 if use_bf16 else jnp.float32
    eye = jnp.eye(pack, dtype=jnp.float32)
    blockdiag = lambda w: jnp.kron(eye, w.astype(jnp.float32)).astype(cdt)
    tiled = lambda b: jnp.tile(b.astype(jnp.float32).reshape(1, -1), (1, pack))
    return (blockdiag(w1), tiled(b1),
            blockdiag(w2), tiled(b2),
            blockdiag(we), tiled(be))


@functools.partial(jax.jit, static_argnames=("block_rows",))
def mlp_encoder_packed(x, w1p, b1p, w2p, b2p, wep, bep, *, block_rows=None):
    """x: (B, goal_dim) f32; packed params from pack_mlp_encoder_params.

    Returns (B, embed_size) f32.
    """
    B, d_in = x.shape
    pack = w1p.shape[0] // d_in
    hp = w1p.shape[1]                      # pack * ae_hid_size
    ep = wep.shape[1]                      # pack * embed_size
    e = ep // pack

    # Only padding left: <= pack-1 rows so the lane-packing re-view is legal.
    bp = _round_up(B, pack)
    if bp != B:
        x = jnp.pad(x, ((0, bp - B), (0, 0)))
    rows = bp // pack
    xp = x.reshape(rows, pack * d_in)      # contiguous re-view, no data movement

    # Batch tile (in packed rows).  >=2 grid steps once rows > 8 so "parallel"
    # can shard across v7x's two TCs; capped at 512 rows (x+out tiles, double
    # buffered, stay < ~2.5 MiB -> safe even under v5e's 16 MiB scoped VMEM).
    if block_rows is None:
        block_rows = rows if rows <= 8 else min(512, _round_up(pl.cdiv(rows, 4), 8))
    else:
        block_rows = max(1, min(int(block_rows), rows))
        if block_rows != rows:
            block_rows = _round_up(block_rows, 8)
            if block_rows >= rows:
                block_rows = rows
    grid = (pl.cdiv(rows, block_rows),)    # ragged last block edge-masked by Pallas

    # Advisory cost (actual MXU work on the packed operands).
    item = jnp.dtype(w1p.dtype).itemsize
    flops = 2 * rows * (pack * d_in * hp + hp * hp + hp * ep) + rows * (2 * hp + ep)
    bytes_accessed = (bp * d_in * 4 + bp * e * 4
                      + (pack * d_in * hp + hp * hp + hp * ep) * item
                      + (2 * hp + ep) * 4)
    cost = pl.CostEstimate(flops=flops, transcendentals=0,
                           bytes_accessed=bytes_accessed)

    grid_spec = pl.GridSpec(
        grid=grid,
        in_specs=[
            pl.BlockSpec((block_rows, pack * d_in), lambda i: (i, 0)),  # x tile
            _resident_spec((pack * d_in, hp)),                          # W1 (block-diag)
            _resident_spec((1, hp)),                                    # b1 (tiled)
            _resident_spec((hp, hp)),                                   # W2 (block-diag)
            _resident_spec((1, hp)),                                    # b2 (tiled)
            _resident_spec((hp, ep)),                                   # We (block-diag)
            _resident_spec((1, ep)),                                    # be (tiled)
        ],
        out_specs=pl.BlockSpec((block_rows, ep), lambda i: (i, 0)),
    )

    out = pl.pallas_call(
        _mlp_encoder_kernel,
        out_shape=jax.ShapeDtypeStruct((rows, ep), jnp.float32),
        grid_spec=grid_spec,
        compiler_params=pltpu.CompilerParams(
            dimension_semantics=("parallel",)),   # megacore / dual-TC sharding
        cost_estimate=cost,
    )(xp, w1p, b1p, w2p, b2p, wep, bep)

    out = out.reshape(bp, e)               # lane-packed -> (rows*pack, embed) re-view
    return out[:B] if bp != B else out


def mlp_encoder(x, w1, b1, w2, b2, we, be, *, pack=8, block_rows=None,
                use_bf16=False):
    """One-shot convenience wrapper (packs params per call; prefer packing once)."""
    packed = pack_mlp_encoder_params(w1, b1, w2, b2, we, be,
                                     pack=pack, use_bf16=use_bf16)
    return mlp_encoder_packed(x, *packed, block_rows=block_rows)


def _init_params(key, goal_dim, hid, embed):
    """Deterministic synthetic parameter init (shapes as in MlpEncoder.__init__)."""
    ks = jax.random.split(key, 6)
    scale = 0.1
    w1 = scale * jax.random.normal(ks[0], (goal_dim, hid), jnp.float32)
    b1 = scale * jax.random.normal(ks[1], (hid,), jnp.float32)
    w2 = scale * jax.random.normal(ks[2], (hid, hid), jnp.float32)
    b2 = scale * jax.random.normal(ks[3], (hid,), jnp.float32)
    we = scale * jax.random.normal(ks[4], (hid, embed), jnp.float32)
    be = scale * jax.random.normal(ks[5], (embed,), jnp.float32)
    return w1, b1, w2, b2, we, be


def _reference(x, w1, b1, w2, b2, we, be):
    h = jnp.maximum(x @ w1 + b1, 0.0)
    h = jnp.maximum(h @ w2 + b2, 0.0)
    return h @ we + be


if __name__ == "__main__":
    # Small shapes consistent with the module:
    #   env_params['goal'] = 16, args.ae_hid_size = 32,
    #   args.ae_n_hids = 2, args.embed_size = 32, args.activ = ReLU
    batch, goal_dim, hid, embed = 16, 16, 32, 32

    key = jax.random.PRNGKey(0)
    kx, kp = jax.random.split(key)
    x = jax.random.normal(kx, (batch, goal_dim), jnp.float32)
    params = _init_params(kp, goal_dim, hid, embed)

    # Pack weights once (block-diagonal, pack=8 -> 128-lane x, 256-lane out).
    packed = pack_mlp_encoder_params(*params, pack=8)

    # 1) Tiny batch: single grid step, f32 operands, exact vs reference.
    out = jax.block_until_ready(mlp_encoder_packed(x, *packed))
    ref = _reference(x, *params)
    assert out.shape == (batch, embed)
    assert jnp.allclose(out, ref, atol=1e-5, rtol=1e-5), "mismatch vs reference"

    # 2) Ragged batch + multi-step grid (pads <=7 rows; last block edge-masked).
    batch2 = 300                                   # not a multiple of pack or tile
    x2 = jax.random.normal(jax.random.PRNGKey(1), (batch2, goal_dim), jnp.float32)
    out2 = jax.block_until_ready(mlp_encoder_packed(x2, *packed, block_rows=16))
    ref2 = _reference(x2, *params)
    assert out2.shape == (batch2, embed)
    assert jnp.allclose(out2, ref2, atol=1e-5, rtol=1e-5), "mismatch (ragged batch)"

    # 3) bf16-operand path: weights pre-cast once; x cast per tile in-kernel;
    #    f32 accumulation / bias / ReLU kept.
    packed_bf16 = pack_mlp_encoder_params(*params, pack=8, use_bf16=True)
    out3 = jax.block_until_ready(mlp_encoder_packed(x2, *packed_bf16))
    assert out3.shape == (batch2, embed)
    assert jnp.allclose(out3, ref2, atol=3e-2, rtol=3e-2), "mismatch (bf16 path)"

    print("KERNEL_OK")
</pallas_src>

<mosaic_0001>
module attributes {stable_mosaic.version = 11 : i64} {
  func.func @_mlp_encoder_kernel(%arg0: i32, %arg1: memref<2x128xf32, #tpu.memory_space<vmem>>, %arg2: memref<128x256xf32, #tpu.memory_space<vmem>>, %arg3: memref<1x256xf32, #tpu.memory_space<vmem>>, %arg4: memref<256x256xf32, #tpu.memory_space<vmem>>, %arg5: memref<1x256xf32, #tpu.memory_space<vmem>>, %arg6: memref<256x256xf32, #tpu.memory_space<vmem>>, %arg7: memref<1x256xf32, #tpu.memory_space<vmem>>, %arg8: memref<2x256xf32, #tpu.memory_space<vmem>>) attributes {dimension_semantics = [#tpu.dimension_semantics<parallel>], iteration_bounds = array<i64: 1>, scalar_prefetch = 0 : i64, scratch_operands = 0 : i64, tpu.core_type = #tpu.core_type<tc>, window_params = [{transform_indices = @transform_0, window_bounds = array<i64: 2, 128>}, {pipeline_mode = #tpu.pipeline_mode<synchronous>, transform_indices = @transform_1, window_bounds = array<i64: 128, 256>}, {pipeline_mode = #tpu.pipeline_mode<synchronous>, transform_indices = @transform_2, window_bounds = array<i64: 1, 256>}, {pipeline_mode = #tpu.pipeline_mode<synchronous>, transform_indices = @transform_3, window_bounds = array<i64: 256, 256>}, {pipeline_mode = #tpu.pipeline_mode<synchronous>, transform_indices = @transform_4, window_bounds = array<i64: 1, 256>}, {pipeline_mode = #tpu.pipeline_mode<synchronous>, transform_indices = @transform_5, window_bounds = array<i64: 256, 256>}, {pipeline_mode = #tpu.pipeline_mode<synchronous>, transform_indices = @transform_6, window_bounds = array<i64: 1, 256>}, {transform_indices = @transform_7, window_bounds = array<i64: 2, 256>}]} {
    %c0 = arith.constant 0 : index
    %c0_0 = arith.constant 0 : index
    %0 = vector.load %arg1[%c0, %c0_0] : memref<2x128xf32, #tpu.memory_space<vmem>>, vector<2x128xf32>
    %c0_1 = arith.constant 0 : index
    %c0_2 = arith.constant 0 : index
    %1 = vector.load %arg2[%c0_1, %c0_2] : memref<128x256xf32, #tpu.memory_space<vmem>>, vector<128x256xf32>
    %cst = arith.constant dense<0.000000e+00> : vector<2x256xf32>
    %2 = tpu.matmul %0, %1, %cst {dimension_numbers = #tpu.dot_dimension_numbers<[1], [0], [0], [1], [0, 0, 1, 1], [], []>} : vector<2x128xf32>, vector<128x256xf32>, vector<2x256xf32> -> vector<2x256xf32>
    %c0_3 = arith.constant 0 : index
    %c0_4 = arith.constant 0 : index
    %3 = vector.load %arg3[%c0_3, %c0_4] : memref<1x256xf32, #tpu.memory_space<vmem>>, vector<1x256xf32>
    %4 = vector.broadcast %3 : vector<1x256xf32> to vector<2x256xf32>
    %5 = arith.addf %2, %4 : vector<2x256xf32>
    %cst_5 = arith.constant 0.000000e+00 : f32
    %6 = vector.broadcast %cst_5 : f32 to vector<2x256xf32>
    %7 = arith.maximumf %5, %6 : vector<2x256xf32>
    %c0_6 = arith.constant 0 : index
    %c0_7 = arith.constant 0 : index
    %8 = vector.load %arg4[%c0_6, %c0_7] : memref<256x256xf32, #tpu.memory_space<vmem>>, vector<256x256xf32>
    %cst_8 = arith.constant dense<0.000000e+00> : vector<2x256xf32>
    %9 = tpu.matmul %7, %8, %cst_8 {dimension_numbers = #tpu.dot_dimension_numbers<[1], [0], [0], [1], [0, 0, 1, 1], [], []>} : vector<2x256xf32>, vector<256x256xf32>, vector<2x256xf32> -> vector<2x256xf32>
    %c0_9 = arith.constant 0 : index
    %c0_10 = arith.constant 0 : index
    %10 = vector.load %arg5[%c0_9, %c0_10] : memref<1x256xf32, #tpu.memory_space<vmem>>, vector<1x256xf32>
    %11 = vector.broadcast %10 : vector<1x256xf32> to vector<2x256xf32>
    %12 = arith.addf %9, %11 : vector<2x256xf32>
    %cst_11 = arith.constant 0.000000e+00 : f32
    %13 = vector.broadcast %cst_11 : f32 to vector<2x256xf32>
    %14 = arith.maximumf %12, %13 : vector<2x256xf32>
    %c0_12 = arith.constant 0 : index
    %c0_13 = arith.constant 0 : index
    %15 = vector.load %arg6[%c0_12, %c0_13] : memref<256x256xf32, #tpu.memory_space<vmem>>, vector<256x256xf32>
    %cst_14 = arith.constant dense<0.000000e+00> : vector<2x256xf32>
    %16 = tpu.matmul %14, %15, %cst_14 {dimension_numbers = #tpu.dot_dimension_numbers<[1], [0], [0], [1], [0, 0, 1, 1], [], []>} : vector<2x256xf32>, vector<256x256xf32>, vector<2x256xf32> -> vector<2x256xf32>
    %c0_15 = arith.constant 0 : index
    %c0_16 = arith.constant 0 : index
    %17 = vector.load %arg7[%c0_15, %c0_16] : memref<1x256xf32, #tpu.memory_space<vmem>>, vector<1x256xf32>
    %18 = vector.broadcast %17 : vector<1x256xf32> to vector<2x256xf32>
    %19 = arith.addf %16, %18 : vector<2x256xf32>
    %c0_17 = arith.constant 0 : index
    %c0_18 = arith.constant 0 : index
    %20 = vector.load %arg8[%c0_17, %c0_18] : memref<2x256xf32, #tpu.memory_space<vmem>>, vector<2x256xf32>
    tpu.vector_store %arg8[%c0_17, %c0_18], %19 {strides = array<i32>} : memref<2x256xf32, #tpu.memory_space<vmem>>, vector<2x256xf32>,
    return
  }
  func.func @transform_0(%arg0: i32) -> (i32, i32) {
    %c0_i32 = arith.constant 0 : i32
    %c0_i32_0 = arith.constant 0 : i32
    return %arg0, %c0_i32 : i32, i32
  }
  func.func @transform_1(%arg0: i32) -> (i32, i32) {
    %c0_i32 = arith.constant 0 : i32
    %c0_i32_0 = arith.constant 0 : i32
    %c0_i32_1 = arith.constant 0 : i32
    return %c0_i32, %c0_i32_0 : i32, i32
  }
  func.func @transform_2(%arg0: i32) -> (i32, i32) {
    %c0_i32 = arith.constant 0 : i32
    %c0_i32_0 = arith.constant 0 : i32
    %c0_i32_1 = arith.constant 0 : i32
    return %c0_i32, %c0_i32_0 : i32, i32
  }
  func.func @transform_3(%arg0: i32) -> (i32, i32) {
    %c0_i32 = arith.constant 0 : i32
    %c0_i32_0 = arith.constant 0 : i32
    %c0_i32_1 = arith.constant 0 : i32
    return %c0_i32, %c0_i32_0 : i32, i32
  }
  func.func @transform_4(%arg0: i32) -> (i32, i32) {
    %c0_i32 = arith.constant 0 : i32
    %c0_i32_0 = arith.constant 0 : i32
    %c0_i32_1 = arith.constant 0 : i32
    return %c0_i32, %c0_i32_0 : i32, i32
  }
  func.func @transform_5(%arg0: i32) -> (i32, i32) {
    %c0_i32 = arith.constant 0 : i32
    %c0_i32_0 = arith.constant 0 : i32
    %c0_i32_1 = arith.constant 0 : i32
    return %c0_i32, %c0_i32_0 : i32, i32
  }
  func.func @transform_6(%arg0: i32) -> (i32, i32) {
    %c0_i32 = arith.constant 0 : i32
    %c0_i32_0 = arith.constant 0 : i32
    %c0_i32_1 = arith.constant 0 : i32
    return %c0_i32, %c0_i32_0 : i32, i32
  }
  func.func @transform_7(%arg0: i32) -> (i32, i32) {
    %c0_i32 = arith.constant 0 : i32
    %c0_i32_0 = arith.constant 0 : i32
    return %arg0, %c0_i32 : i32, i32
  }
}

</mosaic_0001>

<llo_original>
// kernel: mlp_encoder_packed.1
$region0: #{mlp_encoder_packed.1}
  #allocation0 [shape = 'u32[]', space=smem, size = 0x4, offset = 0x4, fixed_abs, tag = 'smem constant byte address 0x4 - core index']
  #allocation1 [shape = 'u32[144,128]{1,0:T(1,128)}', space=vmem, size = 0x12000, scoped, tag = 'internal scratch']
  %s0 = inlined_call_operand.vmem [shape: f32[2,128], index: 0, kind: input, shape index: {}]
  %s1 = inlined_call_operand.hbm [shape: f32[128,256], index: 1, kind: input, shape index: {}]
  %s2 = inlined_call_operand.vmem [shape: f32[1,256], index: 2, kind: input, shape index: {}]
  %s3 = inlined_call_operand.hbm [shape: f32[256,256], index: 3, kind: input, shape index: {}]
  %s4 = inlined_call_operand.vmem [shape: f32[1,256], index: 4, kind: input, shape index: {}]
  %s5 = inlined_call_operand.hbm [shape: f32[256,256], index: 5, kind: input, shape index: {}]
  %s6 = inlined_call_operand.vmem [shape: f32[1,256], index: 6, kind: input, shape index: {}]
  %s7 = inlined_call_operand.vmem [shape: f32[2,256], index: 7, kind: output, shape index: {}]
  %s8 = sld [smem:[#allocation0]]
  $region50: #{mlp_encoder_packed.1} parent=0
    _
  %s10 = ssub.s32 1, %s8
  %s11 = scalar_select 0, %s10, %s8
  $region1: #{mlp_encoder_packed.1} parent=0
    #allocation2 [shape = 'u8[131072]{0}', space=vmem, size = 0x20000, scoped, tag = 'input window, operand 1, single buffered']
    #allocation3 [shape = 's32[1]{0}', space=sflag, size = 0x4, scoped, tag = 'scoped memory for mlp_encoder_packed.1']
    #allocation4 [shape = 'u8[262144]{0}', space=vmem, size = 0x40000, scoped, tag = 'input window, operand 3, single buffered']
    #allocation5 [shape = 's32[1]{0}', space=sflag, size = 0x4, scoped, tag = 'scoped memory for mlp_encoder_packed.1']
    #allocation6 [shape = 'u8[262144]{0}', space=vmem, size = 0x40000, scoped, tag = 'input window, operand 5, single buffered']
    %12 = vsyncpa [#allocation3], 0
    %13 = vsyncpa [#allocation5], 0
    // Predicated region
    $region2: #{mlp_encoder_packed.1} parent=1 // pred_check
      _
    $region3: #{mlp_encoder_packed.1} parent=1 // pred_check_branch
      %15 = sbr.rel (0) target = $region5
    $region4: #{mlp_encoder_packed.1} parent=1 // pred_region
      _
    $region5: #{mlp_encoder_packed.1} parent=1 // pred_fallthru
      _
    // Predicated region
    $region6: #{mlp_encoder_packed.1} parent=1 // pred_check
      _
    $region7: #{mlp_encoder_packed.1} parent=1 // pred_check_branch
      %17 = sbr.rel (0) target = $region9
    $region8: #{mlp_encoder_packed.1} parent=1 // pred_region
      %s19 = ssub.s32 4096, 4096
      %20 = vsyncadd [#allocation3], %s19
      %s21 = sshll.u32 [#allocation2], 4
      %s22 = int_to_ptr.vmem [resolvable:$true] %s21
      %27 = dma.hbm_to_vmem [thread:$0]  %s1, 4096, %s22, [#allocation3], 256, 256, 16
    $region9: #{mlp_encoder_packed.1} parent=1 // pred_fallthru
      _
    // Predicated region
    $region10: #{mlp_encoder_packed.1} parent=1 // pred_check
      _
    $region11: #{mlp_encoder_packed.1} parent=1 // pred_check_branch
      %29 = sbr.rel (0) target = $region13
    $region12: #{mlp_encoder_packed.1} parent=1 // pred_region
      _
    $region13: #{mlp_encoder_packed.1} parent=1 // pred_fallthru
      _
    // Predicated region
    $region14: #{mlp_encoder_packed.1} parent=1 // pred_check
      _
    $region15: #{mlp_encoder_packed.1} parent=1 // pred_check_branch
      %31 = sbr.rel (0) target = $region17
    $region16: #{mlp_encoder_packed.1} parent=1 // pred_region
      %s33 = ssub.s32 8192, 8192
      %34 = vsyncadd [#allocation5], %s33
      %s35 = sshll.u32 [#allocation4], 4
      %s36 = int_to_ptr.vmem [resolvable:$true] %s35
      %41 = dma.hbm_to_vmem [thread:$0]  %s3, 8192, %s36, [#allocation5], 256, 256, 16
    $region17: #{mlp_encoder_packed.1} parent=1 // pred_fallthru
      _
    // Predicated region
    $region18: #{mlp_encoder_packed.1} parent=1 // pred_check
      _
    $region19: #{mlp_encoder_packed.1} parent=1 // pred_check_branch
      %43 = sbr.rel (0) target = $region21
    $region20: #{mlp_encoder_packed.1} parent=1 // pred_region
      _
    $region21: #{mlp_encoder_packed.1} parent=1 // pred_fallthru
      _
    // Predicated region
    $region22: #{mlp_encoder_packed.1} parent=1 // pred_check
      _
    $region23: #{mlp_encoder_packed.1} parent=1 // pred_check_branch
      %45 = sbr.rel (0) target = $region25
    $region24: #{mlp_encoder_packed.1} parent=1 // pred_region
      %s47 = ssub.s32 8192, 8192
      %48 = vsyncadd [#allocation5], %s47
      %s49 = sshll.u32 [#allocation6], 4
      %s50 = int_to_ptr.vmem [resolvable:$true] %s49
      %55 = dma.hbm_to_vmem [thread:$0]  %s5, 8192, %s50, [#allocation5], 256, 256, 16
    $region25: #{mlp_encoder_packed.1} parent=1 // pred_fallthru
      _
    // Predicated region
    $region26: #{mlp_encoder_packed.1} parent=1 // pred_check
      _
    $region27: #{mlp_encoder_packed.1} parent=1 // pred_check_branch
      %57 = sbr.rel (0) target = $region29
    $region28: #{mlp_encoder_packed.1} parent=1 // pred_region
      _
    $region29: #{mlp_encoder_packed.1} parent=1 // pred_fallthru
      _
    // Predicated region
    $region30: #{mlp_encoder_packed.1} parent=1 // pred_check
      _
    $region31: #{mlp_encoder_packed.1} parent=1 // pred_check_branch
      %59 = sbr.rel (0) target = $region33
    $region32: #{mlp_encoder_packed.1} parent=1 // pred_region
      %60 = dma.done [#allocation3], 4096
    $region33: #{mlp_encoder_packed.1} parent=1 // pred_fallthru
      _
    // Predicated region
    $region34: #{mlp_encoder_packed.1} parent=1 // pred_check
      _
    $region35: #{mlp_encoder_packed.1} parent=1 // pred_check_branch
      %62 = sbr.rel (0) target = $region37
    $region36: #{mlp_encoder_packed.1} parent=1 // pred_region
      %63 = dma.done [#allocation5], 8192
    $region37: #{mlp_encoder_packed.1} parent=1 // pred_fallthru
      _
    // Predicated region
    $region38: #{mlp_encoder_packed.1} parent=1 // pred_check
      _
    $region39: #{mlp_encoder_packed.1} parent=1 // pred_check_branch
      %65 = sbr.rel (0) target = $region41
    $region40: #{mlp_encoder_packed.1} parent=1 // pred_region
      %66 = dma.done [#allocation5], 8192
    $region41: #{mlp_encoder_packed.1} parent=1 // pred_fallthru
      _
    %v67 = vld [vmem:[%s0] sm:$0x3]
    %v68 = vld [vmem:[#allocation2] sm:$0xff]
    %v69 = vld [vmem:[#allocation2 + $0x8] sm:$0xff]
    %v70 = vld [vmem:[#allocation2 + $0x10] sm:$0xff]
    %v71 = vld [vmem:[#allocation2 + $0x18] sm:$0xff]
    %v72 = vld [vmem:[#allocation2 + $0x20] sm:$0xff]
    %v73 = vld [vmem:[#allocation2 + $0x28] sm:$0xff]
    %v74 = vld [vmem:[#allocation2 + $0x30] sm:$0xff]
    %v75 = vld [vmem:[#allocation2 + $0x38] sm:$0xff]
    %v76 = vld [vmem:[#allocation2 + $0x40] sm:$0xff]
    %v77 = vld [vmem:[#allocation2 + $0x48] sm:$0xff]
    %v78 = vld [vmem:[#allocation2 + $0x50] sm:$0xff]
    %v79 = vld [vmem:[#allocation2 + $0x58] sm:$0xff]
    %v80 = vld [vmem:[#allocation2 + $0x60] sm:$0xff]
    %v81 = vld [vmem:[#allocation2 + $0x68] sm:$0xff]
    %v82 = vld [vmem:[#allocation2 + $0x70] sm:$0xff]
    %v83 = vld [vmem:[#allocation2 + $0x78] sm:$0xff]
    %v84 = vld [vmem:[#allocation2 + $0x80] sm:$0xff]
    %v85 = vld [vmem:[#allocation2 + $0x88] sm:$0xff]
    %v86 = vld [vmem:[#allocation2 + $0x90] sm:$0xff]
    %v87 = vld [vmem:[#allocation2 + $0x98] sm:$0xff]
    %v88 = vld [vmem:[#allocation2 + $0xa0] sm:$0xff]
    %v89 = vld [vmem:[#allocation2 + $0xa8] sm:$0xff]
    %v90 = vld [vmem:[#allocation2 + $0xb0] sm:$0xff]
    %v91 = vld [vmem:[#allocation2 + $0xb8] sm:$0xff]
    %v92 = vld [vmem:[#allocation2 + $0xc0] sm:$0xff]
    %v93 = vld [vmem:[#allocation2 + $0xc8] sm:$0xff]
    %v94 = vld [vmem:[#allocation2 + $0xd0] sm:$0xff]
    %v95 = vld [vmem:[#allocation2 + $0xd8] sm:$0xff]
    %v96 = vld [vmem:[#allocation2 + $0xe0] sm:$0xff]
    %v97 = vld [vmem:[#allocation2 + $0xe8] sm:$0xff]
    %v98 = vld [vmem:[#allocation2 + $0xf0] sm:$0xff]
    %v99 = vld [vmem:[#allocation2 + $0xf8] sm:$0xff]
    %v100 = vld [vmem:[%s2] sm:$0x3]
    %v102 = vlaneseq
    %v103 = vshrl.u32 %v102, 7
    %v104 = vsub.s32 0, %v103
    %v105 = vrot.slane %v100, %v104
    %v106 = vlaneseq
    %v107 = vshrl.u32 %v106, 7
    %v108 = vsub.s32 1, %v107
    %v109 = vrot.slane %v100, %v108
    %112 = vmatprep.subr.mxu0 %v99
    %113 = vmatpush1.msra.mxu0 %v98
    %114 = vmatprep.subr.mxu0 %v97
    %115 = vmatpush1.msra.mxu0 %v96
    %116 = vmatprep.subr.mxu0 %v95
    %117 = vmatpush1.msra.mxu0 %v94
    %118 = vmatprep.subr.mxu0 %v93
    %119 = vmatpush1.msra.mxu0 %v92
    %120 = vmatprep.subr.mxu0 %v91
    %121 = vmatpush1.msra.mxu0 %v90
    %122 = vmatprep.subr.mxu0 %v89
    %123 = vmatpush1.msra.mxu0 %v88
    %124 = vmatprep.subr.mxu0 %v87
    %125 = vmatpush1.msra.mxu0 %v86
    %126 = vmatprep.subr.mxu0 %v85
    %127 = vmatpush1.msra.mxu0 %v84
    %128 = vmatprep.subr.mxu0 %v83
    %129 = vmatpush1.msra.mxu0 %v82
    %130 = vmatprep.subr.mxu0 %v81
    %131 = vmatpush1.msra.mxu0 %v80
    %132 = vmatprep.subr.mxu0 %v79
    %133 = vmatpush1.msra.mxu0 %v78
    %134 = vmatprep.subr.mxu0 %v77
    %135 = vmatpush1.msra.mxu0 %v76
    %136 = vmatprep.subr.mxu0 %v75
    %137 = vmatpush1.msra.mxu0 %v74
    %138 = vmatprep.subr.mxu0 %v73
    %139 = vmatpush1.msra.mxu0 %v72
    %140 = vmatprep.subr.mxu0 %v71
    %141 = vmatpush1.msra.mxu0 %v70
    %142 = vmatprep.subr.mxu0 %v69
    %143 = vmatpush1.msra.mxu0 %v68
    %144 = vmatprep.subr.mxu0 0.0
    %145 = vmatpush2.msra.mxu0 0.0
    %146 = vmatprep.subr.mxu0 0.0
    %147 = vmatpush2.msra.mxu0 0.0
    %148 = vmatprep.subr.mxu0 0.0
    %149 = vmatpush2.msra.mxu0 0.0
    %150 = vmatprep.subr.mxu0 0.0
    %151 = vmatpush2.msra.mxu0 0.0
    %152 = vmatprep.subr.mxu0 0.0
    %153 = vmatpush2.msra.mxu0 0.0
    %154 = vmatprep.subr.mxu0 0.0
    %155 = vmatpush2.msra.mxu0 0.0
    %156 = vmatprep.subr.mxu0 0.0
    %157 = vmatpush2.msra.mxu0 0.0
    %158 = vmatprep.subr.mxu0 0.0
    %159 = vmatpush2.msra.mxu0 0.0
    %160 = vmatprep.subr.mxu0 0.0
    %161 = vmatpush2.msra.mxu0 0.0
    %162 = vmatprep.subr.mxu0 0.0
    %163 = vmatpush2.msra.mxu0 0.0
    %164 = vmatprep.subr.mxu0 0.0
    %165 = vmatpush2.msra.mxu0 0.0
    %166 = vmatprep.subr.mxu0 0.0
    %167 = vmatpush2.msra.mxu0 0.0
    %168 = vmatprep.subr.mxu0 0.0
    %169 = vmatpush2.msra.mxu0 0.0
    %170 = vmatprep.subr.mxu0 0.0
    %171 = vmatpush2.msra.mxu0 0.0
    %172 = vmatprep.subr.mxu0 0.0
    %173 = vmatpush2.msra.mxu0 0.0
    %174 = vmatprep.subr.mxu0 0.0
    %175 = vmatpush2.msra.mxu0 0.0
    %176 = vmatprep.mubr.f32.mxu0 0.0
    %177 = vmatmul.mubr.f32.gmra.mxu0 %v67
    %v178 = vpop.f32.mrf.mxu0
    %v179 = vadd.f32 %v105, %v178
    %v180 = vpop.f32.mrf.mxu0
    %v181 = vadd.f32 %v109, %v180
    %182 = vdwg.mxu0
    %v183 = vmax.f32 %v179, 0.0
    %v184 = vmax.f32 %v181, 0.0
    %v185 = vld [vmem:[#allocation4] sm:$0xff]
    %v186 = vld [vmem:[#allocation4 + $0x8] sm:$0xff]
    %v187 = vld [vmem:[#allocation4 + $0x10] sm:$0xff]
    %v188 = vld [vmem:[#allocation4 + $0x18] sm:$0xff]
    %v189 = vld [vmem:[#allocation4 + $0x20] sm:$0xff]
    %v190 = vld [vmem:[#allocation4 + $0x28] sm:$0xff]
    %v191 = vld [vmem:[#allocation4 + $0x30] sm:$0xff]
    %v192 = vld [vmem:[#allocation4 + $0x38] sm:$0xff]
    %v193 = vld [vmem:[#allocation4 + $0x40] sm:$0xff]
    %v194 = vld [vmem:[#allocation4 + $0x48] sm:$0xff]
    %v195 = vld [vmem:[#allocation4 + $0x50] sm:$0xff]
    %v196 = vld [vmem:[#allocation4 + $0x58] sm:$0xff]
    %v197 = vld [vmem:[#allocation4 + $0x60] sm:$0xff]
    %v198 = vld [vmem:[#allocation4 + $0x68] sm:$0xff]
    %v199 = vld [vmem:[#allocation4 + $0x70] sm:$0xff]
    %v200 = vld [vmem:[#allocation4 + $0x78] sm:$0xff]
    %v201 = vld [vmem:[#allocation4 + $0x80] sm:$0xff]
    %v202 = vld [vmem:[#allocation4 + $0x88] sm:$0xff]
    %v203 = vld [vmem:[#allocation4 + $0x90] sm:$0xff]
    %v204 = vld [vmem:[#allocation4 + $0x98] sm:$0xff]
    %v205 = vld [vmem:[#allocation4 + $0xa0] sm:$0xff]
    %v206 = vld [vmem:[#allocation4 + $0xa8] sm:$0xff]
    %v207 = vld [vmem:[#allocation4 + $0xb0] sm:$0xff]
    %v208 = vld [vmem:[#allocation4 + $0xb8] sm:$0xff]
    %v209 = vld [vmem:[#allocation4 + $0xc0] sm:$0xff]
    %v210 = vld [vmem:[#allocation4 + $0xc8] sm:$0xff]
    %v211 = vld [vmem:[#allocation4 + $0xd0] sm:$0xff]
    %v212 = vld [vmem:[#allocation4 + $0xd8] sm:$0xff]
    %v213 = vld [vmem:[#allocation4 + $0xe0] sm:$0xff]
    %v214 = vld [vmem:[#allocation4 + $0xe8] sm:$0xff]
    %v215 = vld [vmem:[#allocation4 + $0xf0] sm:$0xff]
    %v216 = vld [vmem:[#allocation4 + $0xf8] sm:$0xff]
    %v217 = vld [vmem:[#allocation4 + $0x100] sm:$0xff]
    %v218 = vld [vmem:[#allocation4 + $0x108] sm:$0xff]
    %v219 = vld [vmem:[#allocation4 + $0x110] sm:$0xff]
    %v220 = vld [vmem:[#allocation4 + $0x118] sm:$0xff]
    %v221 = vld [vmem:[#allocation4 + $0x120] sm:$0xff]
    %v222 = vld [vmem:[#allocation4 + $0x128] sm:$0xff]
    %v223 = vld [vmem:[#allocation4 + $0x130] sm:$0xff]
    %v224 = vld [vmem:[#allocation4 + $0x138] sm:$0xff]
    %v225 = vld [vmem:[#allocation4 + $0x140] sm:$0xff]
    %v226 = vld [vmem:[#allocation4 + $0x148] sm:$0xff]
    %v227 = vld [vmem:[#allocation4 + $0x150] sm:$0xff]
    %v228 = vld [vmem:[#allocation4 + $0x158] sm:$0xff]
    %v229 = vld [vmem:[#allocation4 + $0x160] sm:$0xff]
    %v230 = vld [vmem:[#allocation4 + $0x168] sm:$0xff]
    %v231 = vld [vmem:[#allocation4 + $0x170] sm:$0xff]
    %v232 = vld [vmem:[#allocation4 + $0x178] sm:$0xff]
    %v233 = vld [vmem:[#allocation4 + $0x180] sm:$0xff]
    %v234 = vld [vmem:[#allocation4 + $0x188] sm:$0xff]
    %v235 = vld [vmem:[#allocation4 + $0x190] sm:$0xff]
    %v236 = vld [vmem:[#allocation4 + $0x198] sm:$0xff]
    %v237 = vld [vmem:[#allocation4 + $0x1a0] sm:$0xff]
    %v238 = vld [vmem:[#allocation4 + $0x1a8] sm:$0xff]
    %v239 = vld [vmem:[#allocation4 + $0x1b0] sm:$0xff]
    %v240 = vld [vmem:[#allocation4 + $0x1b8] sm:$0xff]
    %v241 = vld [vmem:[#allocation4 + $0x1c0] sm:$0xff]
    %v242 = vld [vmem:[#allocation4 + $0x1c8] sm:$0xff]
    %v243 = vld [vmem:[#allocation4 + $0x1d0] sm:$0xff]
    %v244 = vld [vmem:[#allocation4 + $0x1d8] sm:$0xff]
    %v245 = vld [vmem:[#allocation4 + $0x1e0] sm:$0xff]
    %v246 = vld [vmem:[#allocation4 + $0x1e8] sm:$0xff]
    %v247 = vld [vmem:[#allocation4 + $0x1f0] sm:$0xff]
    %v248 = vld [vmem:[#allocation4 + $0x1f8] sm:$0xff]
    %v249 = vld [vmem:[%s4] sm:$0x3]
    %v251 = vlaneseq
    %v252 = vshrl.u32 %v251, 7
    %v253 = vsub.s32 0, %v252
    %v254 = vrot.slane %v249, %v253
    %v255 = vlaneseq
    %v256 = vshrl.u32 %v255, 7
    %v257 = vsub.s32 1, %v256
    %v258 = vrot.slane %v249, %v257
    %261 = vmatprep.subr.mxu0 %v216
    %262 = vmatpush1.msra.mxu0 %v215
    %263 = vmatprep.subr.mxu0 %v214
    %264 = vmatpush1.msra.mxu0 %v213
    %265 = vmatprep.subr.mxu0 %v212
    %266 = vmatpush1.msra.mxu0 %v211
    %267 = vmatprep.subr.mxu0 %v210
    %268 = vmatpush1.msra.mxu0 %v209
    %269 = vmatprep.subr.mxu0 %v208
    %270 = vmatpush1.msra.mxu0 %v207
    %271 = vmatprep.subr.mxu0 %v206
    %272 = vmatpush1.msra.mxu0 %v205
    %273 = vmatprep.subr.mxu0 %v204
    %274 = vmatpush1.msra.mxu0 %v203
    %275 = vmatprep.subr.mxu0 %v202
    %276 = vmatpush1.msra.mxu0 %v201
    %277 = vmatprep.subr.mxu0 %v200
    %278 = vmatpush1.msra.mxu0 %v199
    %279 = vmatprep.subr.mxu0 %v198
    %280 = vmatpush1.msra.mxu0 %v197
    %281 = vmatprep.subr.mxu0 %v196
    %282 = vmatpush1.msra.mxu0 %v195
    %283 = vmatprep.subr.mxu0 %v194
    %284 = vmatpush1.msra.mxu0 %v193
    %285 = vmatprep.subr.mxu0 %v192
    %286 = vmatpush1.msra.mxu0 %v191
    %287 = vmatprep.subr.mxu0 %v190
    %288 = vmatpush1.msra.mxu0 %v189
    %289 = vmatprep.subr.mxu0 %v188
    %290 = vmatpush1.msra.mxu0 %v187
    %291 = vmatprep.subr.mxu0 %v186
    %292 = vmatpush1.msra.mxu0 %v185
    %293 = vmatprep.subr.mxu0 %v248
    %294 = vmatpush2.msra.mxu0 %v247
    %295 = vmatprep.subr.mxu0 %v246
    %296 = vmatpush2.msra.mxu0 %v245
    %297 = vmatprep.subr.mxu0 %v244
    %298 = vmatpush2.msra.mxu0 %v243
    %299 = vmatprep.subr.mxu0 %v242
    %300 = vmatpush2.msra.mxu0 %v241
    %301 = vmatprep.subr.mxu0 %v240
    %302 = vmatpush2.msra.mxu0 %v239
    %303 = vmatprep.subr.mxu0 %v238
    %304 = vmatpush2.msra.mxu0 %v237
    %305 = vmatprep.subr.mxu0 %v236
    %306 = vmatpush2.msra.mxu0 %v235
    %307 = vmatprep.subr.mxu0 %v234
    %308 = vmatpush2.msra.mxu0 %v233
    %309 = vmatprep.subr.mxu0 %v232
    %310 = vmatpush2.msra.mxu0 %v231
    %311 = vmatprep.subr.mxu0 %v230
    %312 = vmatpush2.msra.mxu0 %v229
    %313 = vmatprep.subr.mxu0 %v228
    %314 = vmatpush2.msra.mxu0 %v227
    %315 = vmatprep.subr.mxu0 %v226
    %316 = vmatpush2.msra.mxu0 %v225
    %317 = vmatprep.subr.mxu0 %v224
    %318 = vmatpush2.msra.mxu0 %v223
    %319 = vmatprep.subr.mxu0 %v222
    %320 = vmatpush2.msra.mxu0 %v221
    %321 = vmatprep.subr.mxu0 %v220
    %322 = vmatpush2.msra.mxu0 %v219
    %323 = vmatprep.subr.mxu0 %v218
    %324 = vmatpush2.msra.mxu0 %v217
    %325 = vmatprep.mubr.f32.mxu0 %v184
    %326 = vmatmul.mubr.f32.gmra.mxu0 %v183
    %v327 = vpop.f32.mrf.mxu0
    %v328 = vadd.f32 %v254, %v327
    %v329 = vpop.f32.mrf.mxu0
    %v330 = vadd.f32 %v258, %v329
    %331 = vdwg.mxu0
    %v332 = vmax.f32 %v328, 0.0
    %v333 = vmax.f32 %v330, 0.0
    %v334 = vld [vmem:[#allocation6] sm:$0xff]
    %v335 = vld [vmem:[#allocation6 + $0x8] sm:$0xff]
    %v336 = vld [vmem:[#allocation6 + $0x10] sm:$0xff]
    %v337 = vld [vmem:[#allocation6 + $0x18] sm:$0xff]
    %v338 = vld [vmem:[#allocation6 + $0x20] sm:$0xff]
    %v339 = vld [vmem:[#allocation6 + $0x28] sm:$0xff]
    %v340 = vld [vmem:[#allocation6 + $0x30] sm:$0xff]
    %v341 = vld [vmem:[#allocation6 + $0x38] sm:$0xff]
    %v342 = vld [vmem:[#allocation6 + $0x40] sm:$0xff]
    %v343 = vld [vmem:[#allocation6 + $0x48] sm:$0xff]
    %v344 = vld [vmem:[#allocation6 + $0x50] sm:$0xff]
    %v345 = vld [vmem:[#allocation6 + $0x58] sm:$0xff]
    %v346 = vld [vmem:[#allocation6 + $0x60] sm:$0xff]
    %v347 = vld [vmem:[#allocation6 + $0x68] sm:$0xff]
    %v348 = vld [vmem:[#allocation6 + $0x70] sm:$0xff]
    %v349 = vld [vmem:[#allocation6 + $0x78] sm:$0xff]
    %v350 = vld [vmem:[#allocation6 + $0x80] sm:$0xff]
    %v351 = vld [vmem:[#allocation6 + $0x88] sm:$0xff]
    %v352 = vld [vmem:[#allocation6 + $0x90] sm:$0xff]
    %v353 = vld [vmem:[#allocation6 + $0x98] sm:$0xff]
    %v354 = vld [vmem:[#allocation6 + $0xa0] sm:$0xff]
    %v355 = vld [vmem:[#allocation6 + $0xa8] sm:$0xff]
    %v356 = vld [vmem:[#allocation6 + $0xb0] sm:$0xff]
    %v357 = vld [vmem:[#allocation6 + $0xb8] sm:$0xff]
    %v358 = vld [vmem:[#allocation6 + $0xc0] sm:$0xff]
    %v359 = vld [vmem:[#allocation6 + $0xc8] sm:$0xff]
    %v360 = vld [vmem:[#allocation6 + $0xd0] sm:$0xff]
    %v361 = vld [vmem:[#allocation6 + $0xd8] sm:$0xff]
    %v362 = vld [vmem:[#allocation6 + $0xe0] sm:$0xff]
    %v363 = vld [vmem:[#allocation6 + $0xe8] sm:$0xff]
    %v364 = vld [vmem:[#allocation6 + $0xf0] sm:$0xff]
    %v365 = vld [vmem:[#allocation6 + $0xf8] sm:$0xff]
    %v366 = vld [vmem:[#allocation6 + $0x100] sm:$0xff]
    %v367 = vld [vmem:[#allocation6 + $0x108] sm:$0xff]
    %v368 = vld [vmem:[#allocation6 + $0x110] sm:$0xff]
    %v369 = vld [vmem:[#allocation6 + $0x118] sm:$0xff]
    %v370 = vld [vmem:[#allocation6 + $0x120] sm:$0xff]
    %v371 = vld [vmem:[#allocation6 + $0x128] sm:$0xff]
    %v372 = vld [vmem:[#allocation6 + $0x130] sm:$0xff]
    %v373 = vld [vmem:[#allocation6 + $0x138] sm:$0xff]
    %v374 = vld [vmem:[#allocation6 + $0x140] sm:$0xff]
    %v375 = vld [vmem:[#allocation6 + $0x148] sm:$0xff]
    %v376 = vld [vmem:[#allocation6 + $0x150] sm:$0xff]
    %v377 = vld [vmem:[#allocation6 + $0x158] sm:$0xff]
    %v378 = vld [vmem:[#allocation6 + $0x160] sm:$0xff]
    %v379 = vld [vmem:[#allocation6 + $0x168] sm:$0xff]
    %v380 = vld [vmem:[#allocation6 + $0x170] sm:$0xff]
    %v381 = vld [vmem:[#allocation6 + $0x178] sm:$0xff]
    %v382 = vld [vmem:[#allocation6 + $0x180] sm:$0xff]
    %v383 = vld [vmem:[#allocation6 + $0x188] sm:$0xff]
    %v384 = vld [vmem:[#allocation6 + $0x190] sm:$0xff]
    %v385 = vld [vmem:[#allocation6 + $0x198] sm:$0xff]
    %v386 = vld [vmem:[#allocation6 + $0x1a0] sm:$0xff]
    %v387 = vld [vmem:[#allocation6 + $0x1a8] sm:$0xff]
    %v388 = vld [vmem:[#allocation6 + $0x1b0] sm:$0xff]
    %v389 = vld [vmem:[#allocation6 + $0x1b8] sm:$0xff]
    %v390 = vld [vmem:[#allocation6 + $0x1c0] sm:$0xff]
    %v391 = vld [vmem:[#allocation6 + $0x1c8] sm:$0xff]
    %v392 = vld [vmem:[#allocation6 + $0x1d0] sm:$0xff]
    %v393 = vld [vmem:[#allocation6 + $0x1d8] sm:$0xff]
    %v394 = vld [vmem:[#allocation6 + $0x1e0] sm:$0xff]
    %v395 = vld [vmem:[#allocation6 + $0x1e8] sm:$0xff]
    %v396 = vld [vmem:[#allocation6 + $0x1f0] sm:$0xff]
    %v397 = vld [vmem:[#allocation6 + $0x1f8] sm:$0xff]
    %v398 = vld [vmem:[%s6] sm:$0x3]
    %v400 = vlaneseq
    %v401 = vshrl.u32 %v400, 7
    %v402 = vsub.s32 0, %v401
    %v403 = vrot.slane %v398, %v402
    %v404 = vlaneseq
    %v405 = vshrl.u32 %v404, 7
    %v406 = vsub.s32 1, %v405
    %v407 = vrot.slane %v398, %v406
    %410 = vmatprep.subr.mxu0 %v365
    %411 = vmatpush1.msra.mxu0 %v364
    %412 = vmatprep.subr.mxu0 %v363
    %413 = vmatpush1.msra.mxu0 %v362
    %414 = vmatprep.subr.mxu0 %v361
    %415 = vmatpush1.msra.mxu0 %v360
    %416 = vmatprep.subr.mxu0 %v359
    %417 = vmatpush1.msra.mxu0 %v358
    %418 = vmatprep.subr.mxu0 %v357
    %419 = vmatpush1.msra.mxu0 %v356
    %420 = vmatprep.subr.mxu0 %v355
    %421 = vmatpush1.msra.mxu0 %v354
    %422 = vmatprep.subr.mxu0 %v353
    %423 = vmatpush1.msra.mxu0 %v352
    %424 = vmatprep.subr.mxu0 %v351
    %425 = vmatpush1.msra.mxu0 %v350
    %426 = vmatprep.subr.mxu0 %v349
    %427 = vmatpush1.msra.mxu0 %v348
    %428 = vmatprep.subr.mxu0 %v347
    %429 = vmatpush1.msra.mxu0 %v346
    %430 = vmatprep.subr.mxu0 %v345
    %431 = vmatpush1.msra.mxu0 %v344
    %432 = vmatprep.subr.mxu0 %v343
    %433 = vmatpush1.msra.mxu0 %v342
    %434 = vmatprep.subr.mxu0 %v341
    %435 = vmatpush1.msra.mxu0 %v340
    %436 = vmatprep.subr.mxu0 %v339
    %437 = vmatpush1.msra.mxu0 %v338
    %438 = vmatprep.subr.mxu0 %v337
    %439 = vmatpush1.msra.mxu0 %v336
    %440 = vmatprep.subr.mxu0 %v335
    %441 = vmatpush1.msra.mxu0 %v334
    %442 = vmatprep.subr.mxu0 %v397
    %443 = vmatpush2.msra.mxu0 %v396
    %444 = vmatprep.subr.mxu0 %v395
    %445 = vmatpush2.msra.mxu0 %v394
    %446 = vmatprep.subr.mxu0 %v393
    %447 = vmatpush2.msra.mxu0 %v392
    %448 = vmatprep.subr.mxu0 %v391
    %449 = vmatpush2.msra.mxu0 %v390
    %450 = vmatprep.subr.mxu0 %v389
    %451 = vmatpush2.msra.mxu0 %v388
    %452 = vmatprep.subr.mxu0 %v387
    %453 = vmatpush2.msra.mxu0 %v386
    %454 = vmatprep.subr.mxu0 %v385
    %455 = vmatpush2.msra.mxu0 %v384
    %456 = vmatprep.subr.mxu0 %v383
    %457 = vmatpush2.msra.mxu0 %v382
    %458 = vmatprep.subr.mxu0 %v381
    %459 = vmatpush2.msra.mxu0 %v380
    %460 = vmatprep.subr.mxu0 %v379
    %461 = vmatpush2.msra.mxu0 %v378
    %462 = vmatprep.subr.mxu0 %v377
    %463 = vmatpush2.msra.mxu0 %v376
    %464 = vmatprep.subr.mxu0 %v375
    %465 = vmatpush2.msra.mxu0 %v374
    %466 = vmatprep.subr.mxu0 %v373
    %467 = vmatpush2.msra.mxu0 %v372
    %468 = vmatprep.subr.mxu0 %v371
    %469 = vmatpush2.msra.mxu0 %v370
    %470 = vmatprep.subr.mxu0 %v369
    %471 = vmatpush2.msra.mxu0 %v368
    %472 = vmatprep.subr.mxu0 %v367
    %473 = vmatpush2.msra.mxu0 %v366
    %474 = vmatprep.mubr.f32.mxu0 %v333
    %475 = vmatmul.mubr.f32.gmra.mxu0 %v332
    %v476 = vpop.f32.mrf.mxu0
    %v477 = vadd.f32 %v403, %v476
    %v478 = vpop.f32.mrf.mxu0
    %v479 = vadd.f32 %v407, %v478
    %480 = vdwg.mxu0
    %v483 = vcombine.low %v477, %v479
    %v485 = vunpack.c.l.s4 1983009808
    %v486 = vunpack.c.0.s8 %v485
    %v487 = vlaneseq
    %v488 = vshrl.u32 %v487, 7
    %v489 = vsub.s32 %v486, %v488
    %v490 = vrot.slane %v483, %v489
    %492 = vst [vmem:[%s7] sm:$0xf] %v490
    // Predicated region
    $region42: #{mlp_encoder_packed.1} parent=1 // pred_check
      _
    $region43: #{mlp_encoder_packed.1} parent=1 // pred_check_branch
      %494 = sbr.rel (0) target = $region45
    $region44: #{mlp_encoder_packed.1} parent=1 // pred_region
      _
    $region45: #{mlp_encoder_packed.1} parent=1 // pred_fallthru
      _
    // Predicated region
    $region46: #{mlp_encoder_packed.1} parent=1 // pred_check
      _
    $region47: #{mlp_encoder_packed.1} parent=1 // pred_check_branch
      %496 = sbr.rel (0) target = $region49
    $region48: #{mlp_encoder_packed.1} parent=1 // pred_region
      _
    $region49: #{mlp_encoder_packed.1} parent=1 // pred_fallthru
      _
    %497 = vsyncpa [#allocation3], 1
    %498 = vsyncpa [#allocation5], 1

</llo_original>
